<compile_context>
chip_gen: v6e
topology: v6e:2x2x1
jax: 0.10.0
libtpu: 0.0.40
codegen_flags: <defaults>
</compile_context>

<pallas_src>
import jax
import jax.numpy as jnp
import numpy as np
from jax.experimental import pallas as pl
from jax.experimental.pallas import tpu as pltpu


def _enc_channels(channels: int) -> int:
    """Mirrors the __init__ channel rounding: ceil(ch/6)*2, bumped to even."""
    ch = int(np.ceil(channels / 6) * 2)
    if ch % 2:
        ch += 1
    return ch


def _build_lane_tables(Y, Z, enc_ch, c_out):
    """Per-lane tables for the folded (Y, Z, c_out) lane axis.

    lane_fx[l] : inv_freq for x-segment lanes, 0 otherwise.
    lane_c[l]  : y*inv_freq / z*inv_freq for y/z-segment lanes (0 for x lanes)
                 plus pi/2 on cos lanes, so the kernel emits sin(x*fx + c).
    """
    half = enc_ch // 2
    inv_freq = 1.0 / (10000.0 ** (jnp.arange(0, enc_ch, 2, dtype=jnp.float32) / enc_ch))
    freq = jnp.concatenate([inv_freq, inv_freq])                      # (enc_ch,) [sin|cos]
    phase = jnp.concatenate([jnp.zeros((half,), jnp.float32),
                             jnp.full((half,), jnp.pi / 2, jnp.float32)])
    zeros = jnp.zeros((enc_ch,), jnp.float32)
    # Per-output-channel tables over the 3*enc_ch columns, truncated to c_out.
    ch_fx = jnp.concatenate([freq, zeros, zeros])[:c_out]
    ch_fy = jnp.concatenate([zeros, freq, zeros])[:c_out]
    ch_fz = jnp.concatenate([zeros, zeros, freq])[:c_out]
    ch_ph = jnp.tile(phase, 3)[:c_out]

    ypos = jnp.arange(Y, dtype=jnp.float32)[:, None, None]
    zpos = jnp.arange(Z, dtype=jnp.float32)[None, :, None]
    L = Y * Z * c_out
    lane_fx = jnp.broadcast_to(ch_fx[None, None, :], (Y, Z, c_out)).reshape(1, L)
    lane_c = (ypos * ch_fy + zpos * ch_fz + ch_ph).reshape(1, L)
    return lane_fx, lane_c


def _choose_tile_x(X: int, L: int, itemsize: int) -> int:
    """Largest x-tile that divides X, is a sublane multiple, and keeps one
    output block <= ~4 MiB (double-buffering + lane tables then stay well
    under v7x's 64 MiB VMEM; v5e/v6e have even more headroom)."""
    if X % 8 != 0:
        return X            # full-extent block for small / odd X
    budget = 4 * 1024 * 1024
    tx = 8
    while tx * 2 <= X and X % (tx * 2) == 0 and tx * 2 * L * itemsize <= budget:
        tx *= 2
    return tx


def _pe3d_kernel(fx_ref, c_ref, o_ref):
    """One grid step writes a lane-dense (tx, Y*Z*c_out) slab: sin(x*fx + c)."""
    tx, L = o_ref.shape
    x0 = (pl.program_id(0) * tx).astype(jnp.float32)
    xv = jax.lax.broadcasted_iota(jnp.int32, (tx, L), 0).astype(jnp.float32) + x0
    o_ref[...] = jnp.sin(xv * fx_ref[...] + c_ref[...]).astype(o_ref.dtype)


def positional_encoding_3d(tensor, channels):
    """Pallas implementation of PositionalEncoding3D(channels)(tensor)."""
    if tensor.ndim != 5:
        raise RuntimeError('The input tensor has to be 5d!')
    B, X, Y, Z, orig_ch = tensor.shape
    enc_ch = _enc_channels(channels)
    c_out = min(orig_ch, 3 * enc_ch)          # mirrors emb[..., :orig_ch]
    L = Y * Z * c_out

    lane_fx, lane_c = _build_lane_tables(Y, Z, enc_ch, c_out)
    tx = _choose_tile_x(X, L, np.dtype(tensor.dtype).itemsize)

    emb = pl.pallas_call(
        _pe3d_kernel,
        out_shape=jax.ShapeDtypeStruct((X, L), tensor.dtype),
        grid=(X // tx,),
        in_specs=[pl.BlockSpec((1, L), lambda i: (0, 0)),
                  pl.BlockSpec((1, L), lambda i: (0, 0))],
        out_specs=pl.BlockSpec((tx, L), lambda i: (i, 0)),
        compiler_params=pltpu.CompilerParams(
            dimension_semantics=("parallel",),
            vmem_limit_bytes=32 * 1024 * 1024,
        ),
    )(lane_fx, lane_c)

    # Free reshape (row-major compatible) + lazy batch broadcast.
    emb = emb.reshape(X, Y, Z, c_out)
    return jnp.broadcast_to(emb[None], (B, X, Y, Z, c_out))


def positional_encoding_3d_reference(tensor, channels):
    """Pure-JAX reference mirroring the PyTorch forward line by line."""
    B, X, Y, Z, orig_ch = tensor.shape
    enc_ch = _enc_channels(channels)
    inv_freq = 1.0 / (10000.0 ** (jnp.arange(0, enc_ch, 2, dtype=jnp.float32) / enc_ch))
    pos_x = jnp.arange(X, dtype=jnp.float32)
    pos_y = jnp.arange(Y, dtype=jnp.float32)
    pos_z = jnp.arange(Z, dtype=jnp.float32)
    sx = jnp.einsum('i,j->ij', pos_x, inv_freq)
    sy = jnp.einsum('i,j->ij', pos_y, inv_freq)
    sz = jnp.einsum('i,j->ij', pos_z, inv_freq)
    emb_x = jnp.concatenate([jnp.sin(sx), jnp.cos(sx)], -1)[:, None, None, :]
    emb_y = jnp.concatenate([jnp.sin(sy), jnp.cos(sy)], -1)[None, :, None, :]
    emb_z = jnp.concatenate([jnp.sin(sz), jnp.cos(sz)], -1)[None, None, :, :]
    emb = jnp.zeros((X, Y, Z, 3 * enc_ch), tensor.dtype)
    emb = emb.at[..., :enc_ch].set(jnp.broadcast_to(emb_x, (X, Y, Z, enc_ch)))
    emb = emb.at[..., enc_ch:2 * enc_ch].set(jnp.broadcast_to(emb_y, (X, Y, Z, enc_ch)))
    emb = emb.at[..., 2 * enc_ch:].set(jnp.broadcast_to(emb_z, (X, Y, Z, enc_ch)))
    return jnp.broadcast_to(emb[None, ..., :orig_ch], (B, X, Y, Z, orig_ch))


if __name__ == "__main__":
    key = jax.random.PRNGKey(0)
    B, X, Y, Z, C = 2, 8, 8, 4, 16
    x = jax.random.normal(key, (B, X, Y, Z, C), dtype=jnp.float32)

    out = jax.block_until_ready(positional_encoding_3d(x, channels=C))
    ref = positional_encoding_3d_reference(x, channels=C)

    assert out.shape == (B, X, Y, Z, C), out.shape
    assert out.dtype == x.dtype, out.dtype
    np.testing.assert_allclose(np.asarray(out), np.asarray(ref), rtol=1e-5, atol=1e-5)

    print("KERNEL_OK")
</pallas_src>

<mosaic_0001>
module attributes {stable_mosaic.version = 11 : i64} {
  func.func @_pe3d_kernel(%arg0: i32, %arg1: memref<1x512xf32, #tpu.memory_space<vmem>>, %arg2: memref<1x512xf32, #tpu.memory_space<vmem>>, %arg3: memref<8x512xf32, #tpu.memory_space<vmem>>) attributes {dimension_semantics = [#tpu.dimension_semantics<parallel>], iteration_bounds = array<i64: 1>, scalar_prefetch = 0 : i64, scratch_operands = 0 : i64, tpu.core_type = #tpu.core_type<tc>, window_params = [{pipeline_mode = #tpu.pipeline_mode<synchronous>, transform_indices = @transform_0, window_bounds = array<i64: 1, 512>}, {pipeline_mode = #tpu.pipeline_mode<synchronous>, transform_indices = @transform_1, window_bounds = array<i64: 1, 512>}, {transform_indices = @transform_2, window_bounds = array<i64: 8, 512>}]} {
    %c8_i32 = arith.constant 8 : i32
    %0 = arith.muli %arg0, %c8_i32 : i32
    %1 = arith.sitofp %0 : i32 to f32
    %2 = tpu.iota {dimensions = array<i32: 0>} : vector<8x512xi32>
    %3 = arith.sitofp %2 : vector<8x512xi32> to vector<8x512xf32>
    %4 = vector.broadcast %1 : f32 to vector<8x512xf32>
    %5 = arith.addf %3, %4 : vector<8x512xf32>
    %c0 = arith.constant 0 : index
    %c0_0 = arith.constant 0 : index
    %6 = vector.load %arg1[%c0, %c0_0] : memref<1x512xf32, #tpu.memory_space<vmem>>, vector<1x512xf32>
    %7 = vector.broadcast %6 : vector<1x512xf32> to vector<8x512xf32>
    %8 = arith.mulf %5, %7 : vector<8x512xf32>
    %c0_1 = arith.constant 0 : index
    %c0_2 = arith.constant 0 : index
    %9 = vector.load %arg2[%c0_1, %c0_2] : memref<1x512xf32, #tpu.memory_space<vmem>>, vector<1x512xf32>
    %10 = vector.broadcast %9 : vector<1x512xf32> to vector<8x512xf32>
    %11 = arith.addf %8, %10 : vector<8x512xf32>
    %12 = math.sin %11 : vector<8x512xf32>
    %c0_3 = arith.constant 0 : index
    %c0_4 = arith.constant 0 : index
    %13 = vector.load %arg3[%c0_3, %c0_4] : memref<8x512xf32, #tpu.memory_space<vmem>>, vector<8x512xf32>
    tpu.vector_store %arg3[%c0_3, %c0_4], %12 {strides = array<i32>} : memref<8x512xf32, #tpu.memory_space<vmem>>, vector<8x512xf32>,
    return
  }
  func.func @transform_0(%arg0: i32) -> (i32, i32) {
    %c0_i32 = arith.constant 0 : i32
    %c0_i32_0 = arith.constant 0 : i32
    %c0_i32_1 = arith.constant 0 : i32
    return %c0_i32, %c0_i32_0 : i32, i32
  }
  func.func @transform_1(%arg0: i32) -> (i32, i32) {
    %c0_i32 = arith.constant 0 : i32
    %c0_i32_0 = arith.constant 0 : i32
    %c0_i32_1 = arith.constant 0 : i32
    return %c0_i32, %c0_i32_0 : i32, i32
  }
  func.func @transform_2(%arg0: i32) -> (i32, i32) {
    %c0_i32 = arith.constant 0 : i32
    %c0_i32_0 = arith.constant 0 : i32
    return %arg0, %c0_i32 : i32, i32
  }
}

</mosaic_0001>

<llo_original>
// kernel: tpu_custom_call.1
$region0: #{tpu_custom_call.1}
  #allocation0 [shape = 'u32[]', space=smem, size = 0x4, offset = 0x4, fixed_abs, tag = 'smem constant byte address 0x4 - core index']
  #allocation1 [shape = 'u32[144,128]{1,0:T(1,128)}', space=vmem, size = 0x12000, scoped, tag = 'internal scratch']
  %s0 = inlined_call_operand.hbm [shape: f32[1,512], index: 0, kind: input, shape index: {}]
  %s1 = inlined_call_operand.hbm [shape: f32[1,512], index: 1, kind: input, shape index: {}]
  %s2 = inlined_call_operand.hbm [shape: f32[8,512], index: 2, kind: output, shape index: {}]
  %s3 = sld [smem:[#allocation0]]
  $region26: #{tpu_custom_call.1} parent=0
    _
  %s5 = ssub.s32 1, %s3
  %s6 = scalar_select 0, %s5, %s3
  $region1: #{tpu_custom_call.1} parent=0
    #allocation2 [shape = 'u8[2048]{0}', space=vmem, size = 0x800, scoped, tag = 'input window, operand 0, single buffered']
    #allocation3 [shape = 's32[1]{0}', space=sflag, size = 0x4, scoped, tag = 'scoped memory for tpu_custom_call.1']
    #allocation4 [shape = 's32[1]{0}', space=sflag, size = 0x4, scoped, tag = 'scoped memory for tpu_custom_call.1']
    #allocation5 [shape = 'u8[2048]{0}', space=vmem, size = 0x800, scoped, tag = 'input window, operand 1, single buffered']
    #allocation6 [shape = 's32[1]{0}', space=sflag, size = 0x4, scoped, tag = 'scoped memory for tpu_custom_call.1']
    #allocation7 [shape = 'u8[16384]{0}', space=vmem, size = 0x4000, scoped, tag = 'output window, operand 0, single buffered']
    %7 = vsyncpa [#allocation3], 0
    %8 = vsyncpa [#allocation6], 0
    %9 = vsyncpa [#allocation4], 0
    // Predicated region
    $region2: #{tpu_custom_call.1} parent=1 // pred_check
      _
    $region3: #{tpu_custom_call.1} parent=1 // pred_check_branch
      %11 = sbr.rel (0) target = $region5
    $region4: #{tpu_custom_call.1} parent=1 // pred_region
      %s13 = ssub.s32 64, 64
      %14 = vsyncadd [#allocation3], %s13
      %s16 = sshll.u32 [#allocation2], 4
      %s17 = int_to_ptr.vmem [resolvable:$true] %s16
      %19 = dma.hbm_to_vmem [thread:$0]  %s0, 64, %s17, [#allocation3]
    $region5: #{tpu_custom_call.1} parent=1 // pred_fallthru
      _
    // Predicated region
    $region6: #{tpu_custom_call.1} parent=1 // pred_check
      _
    $region7: #{tpu_custom_call.1} parent=1 // pred_check_branch
      %21 = sbr.rel (0) target = $region9
    $region8: #{tpu_custom_call.1} parent=1 // pred_region
      %s23 = ssub.s32 64, 64
      %24 = vsyncadd [#allocation6], %s23
      %s26 = sshll.u32 [#allocation5], 4
      %s27 = int_to_ptr.vmem [resolvable:$true] %s26
      %29 = dma.hbm_to_vmem [thread:$0]  %s1, 64, %s27, [#allocation6]
    $region9: #{tpu_custom_call.1} parent=1 // pred_fallthru
      _
    // Predicated region
    $region10: #{tpu_custom_call.1} parent=1 // pred_check
      _
    $region11: #{tpu_custom_call.1} parent=1 // pred_check_branch
      %31 = sbr.rel (0) target = $region13
    $region12: #{tpu_custom_call.1} parent=1 // pred_region
      %32 = dma.done [#allocation3], 64
    $region13: #{tpu_custom_call.1} parent=1 // pred_fallthru
      _
    // Predicated region
    $region14: #{tpu_custom_call.1} parent=1 // pred_check
      _
    $region15: #{tpu_custom_call.1} parent=1 // pred_check_branch
      %34 = sbr.rel (0) target = $region17
    $region16: #{tpu_custom_call.1} parent=1 // pred_region
      %35 = dma.done [#allocation6], 64
    $region17: #{tpu_custom_call.1} parent=1 // pred_fallthru
      _
    %s36 = smul.u32 0, 8
    %s37 = scvt.s32.f32 %s36
    %v38 = vlaneseq
    %v39 = vshrl.u32 %v38, 7
    %v40 = vcvt.s32.f32 %v39
    %v41 = vstv %s37
    %v42 = vadd.f32 %v40, %v41
    %v43 = vld [vmem:[#allocation2] sm:$0xf]
    %v45 = vlaneseq
    %v46 = vshrl.u32 %v45, 7
    %v47 = vsub.s32 0, %v46
    %v48 = vrot.slane %v43, %v47
    %v49 = vlaneseq
    %v50 = vshrl.u32 %v49, 7
    %v51 = vsub.s32 1, %v50
    %v52 = vrot.slane %v43, %v51
    %v53 = vlaneseq
    %v54 = vshrl.u32 %v53, 7
    %v55 = vsub.s32 2, %v54
    %v56 = vrot.slane %v43, %v55
    %v57 = vlaneseq
    %v58 = vshrl.u32 %v57, 7
    %v59 = vsub.s32 3, %v58
    %v60 = vrot.slane %v43, %v59
    %v65 = vmul.f32 %v42, %v48
    %v66 = vmul.f32 %v42, %v52
    %v67 = vmul.f32 %v42, %v56
    %v68 = vmul.f32 %v42, %v60
    %v69 = vld [vmem:[#allocation5] sm:$0xf]
    %v71 = vlaneseq
    %v72 = vshrl.u32 %v71, 7
    %v73 = vsub.s32 0, %v72
    %v74 = vrot.slane %v69, %v73
    %v75 = vlaneseq
    %v76 = vshrl.u32 %v75, 7
    %v77 = vsub.s32 1, %v76
    %v78 = vrot.slane %v69, %v77
    %v79 = vlaneseq
    %v80 = vshrl.u32 %v79, 7
    %v81 = vsub.s32 2, %v80
    %v82 = vrot.slane %v69, %v81
    %v83 = vlaneseq
    %v84 = vshrl.u32 %v83, 7
    %v85 = vsub.s32 3, %v84
    %v86 = vrot.slane %v69, %v85
    %v91 = vadd.f32 %v65, %v74
    %v92 = vadd.f32 %v66, %v78
    %v93 = vadd.f32 %v67, %v82
    %v94 = vadd.f32 %v68, %v86
    %v95 = vand.u32 2147483647, %v91
    %vm96 = vcmp.le.f32.partialorder %v95, 0.7853982
    %vm97 = vcmp.lt.s32.totalorder %v91, 0
    %v98 = vand.u32 %v91, 2139095040
    %v99 = vshrl.u32 %v98, 23
    %v100 = vsub.s32 %v99, 127
    %v101 = vand.u32 2147483647, %v91
    %v102 = vand.u32 %v101, 8388607
    %v103 = vor.u32 %v102, 8388608
    %v104 = vsub.s32 0, %v103
    %v105 = vadd.s32 %v100, 1
    %vm106 = vcmp.gt.s32.totalorder %v105, 0
    %v107 = vsel %vm106, %v105, 0
    %v108 = vshrl.u32 %v107, 5
    %v109 = vand.u32 %v107, 31
    %v110 = vsub.s32 32, %v109
    %v111 = vshrl.u32 683565275, %v110
    %v112 = vshll.u32 683565275, %v109
    %v113 = vshrl.u32 2475754826, %v110
    %v114 = vor.u32 %v112, %v113
    %v115 = vshll.u32 2475754826, %v109
    %v116 = vshrl.u32 2131351028, %v110
    %v117 = vor.u32 %v115, %v116
    %v118 = vshll.u32 2131351028, %v109
    %v119 = vshrl.u32 2102212464, %v110
    %v120 = vor.u32 %v118, %v119
    %v121 = vshll.u32 2102212464, %v109
    %v122 = vshrl.u32 920167782, %v110
    %v123 = vor.u32 %v121, %v122
    %v124 = vshll.u32 920167782, %v109
    %v125 = vshrl.u32 1326507024, %v110
    %v126 = vor.u32 %v124, %v125
    %vm127 = vcmp.lt.s32.totalorder %v108, 1
    %vm128 = vcmp.lt.s32.totalorder %v108, 2
    %vm129 = vcmp.lt.s32.totalorder %v108, 3
    %vm130 = vcmp.lt.s32.totalorder %v108, 4
    %v131 = vsel %vm127, %v111, %v114
    %v132 = vsel %vm130, %v120, 2102212464
    %v133 = vsel %vm129, %v117, %v132
    %v134 = vsel %vm128, %v131, %v133
    %v135 = vsel %vm127, %v114, %v117
    %v136 = vsel %vm130, %v123, 920167782
    %v137 = vsel %vm129, %v120, %v136
    %v138 = vsel %vm128, %v135, %v137
    %v139 = vsel %vm127, %v117, %v120
    %v140 = vsel %vm130, %v126, 1326507024
    %v141 = vsel %vm129, %v123, %v140
    %v142 = vsel %vm128, %v139, %v141
    %v143 = vshll.u32 %v103, 8
    %v144 = vmul.u32.u64.compose %v143, %v142
    %v145 = vextract.low.u32 %v144
    %v146 = vextract.high.u32 %v144
    %v147 = vmul.u32.u64.compose %v143, %v138
    %v148 = vextract.low.u32 %v147
    %v149 = vextract.high.u32 %v147
    %v150 = vmul.u32 %v143, %v134
    %v151 = vadd.s32 %v146, %v148
    %vm152 = vc.u32 %v146, %v148
    %v153 = vadd.s32 %v149, 1
    %v154 = vsel %vm152, %v153, %v149
    %v155 = vadd.s32 %v150, %v154
    %v156 = vadd.s32 %v155, 536870912
    %v157 = vshrl.u32 %v156, 30
    %v158 = vshll.u32 %v157, 30
    %v159 = vsub.s32 %v155, %v158
    %vm160 = vcmp.lt.s32.totalorder %v159, 0
    %v161 = vsub.s32 0, %v159
    %v162 = vsel %vm160, %v161, %v159
    %v163 = vclz %v162
    %v164 = vsub.s32 %v163, 2
    %vm165 = vcmp.gt.s32.totalorder 0, %v164
    %v166 = vsel %vm165, 0, %v164
    %v167 = vsub.s32 32, %v166
    %v168 = vshll.u32 %v159, %v166
    %v169 = vshrl.u32 %v151, %v167
    %v170 = vor.u32 %v168, %v169
    %v171 = vsub.s32 4294967266, %v166
    %v172 = vadd.s32 %v171, 127
    %v173 = vshll.u32 %v172, 23
    %v174 = vor.u32 4788187, %v173
    %v175 = vand.u32 2147483647, %v174
    %v177 = vcvt.s32.f32 %v170
    %v178 = vmul.f32 %v177, %v175
    %v179 = vxor.u32 %v178, 2147483648
    %v180 = vsel %vm97, %v179, %v178
    %v181 = vsub.s32 4, %v157
    %v182 = vsel %vm97, %v181, %v157
    %v183 = vsel %vm96, %v91, %v180
    %v184 = vsel %vm96, 0, %v182
    %v185 = vcosq.f32.pop %v183
    %v186 = vsinq.f32.pop %v183
    %vm187 = vweird.f32 %v91
    %v188 = vadd.s32 %v184, 3
    %v189 = vand.u32 %v188, 3
    %vm190 = vcmp.lt.s32.totalorder %v189, 2
    %vm191 = vcmp.eq.s32.totalorder %v189, 0
    %v192 = vxor.u32 %v186, 2147483648
    %v193 = vsel %vm191, %v185, %v192
    %vm194 = vcmp.eq.s32.totalorder %v189, 2
    %v195 = vxor.u32 %v185, 2147483648
    %v196 = vsel %vm194, %v195, %v186
    %v197 = vsel %vm190, %v193, %v196
    %v198 = vsel %vm187, nan, %v197
    %v199 = vand.u32 2147483647, %v92
    %vm200 = vcmp.le.f32.partialorder %v199, 0.7853982
    %vm201 = vcmp.lt.s32.totalorder %v92, 0
    %v202 = vand.u32 %v92, 2139095040
    %v203 = vshrl.u32 %v202, 23
    %v204 = vsub.s32 %v203, 127
    %v205 = vand.u32 2147483647, %v92
    %v206 = vand.u32 %v205, 8388607
    %v207 = vor.u32 %v206, 8388608
    %v208 = vsub.s32 0, %v207
    %v209 = vadd.s32 %v204, 1
    %vm210 = vcmp.gt.s32.totalorder %v209, 0
    %v211 = vsel %vm210, %v209, 0
    %v212 = vshrl.u32 %v211, 5
    %v213 = vand.u32 %v211, 31
    %v214 = vsub.s32 32, %v213
    %v215 = vshrl.u32 683565275, %v214
    %v216 = vshll.u32 683565275, %v213
    %v217 = vshrl.u32 2475754826, %v214
    %v218 = vor.u32 %v216, %v217
    %v219 = vshll.u32 2475754826, %v213
    %v220 = vshrl.u32 2131351028, %v214
    %v221 = vor.u32 %v219, %v220
    %v222 = vshll.u32 2131351028, %v213
    %v223 = vshrl.u32 2102212464, %v214
    %v224 = vor.u32 %v222, %v223
    %v225 = vshll.u32 2102212464, %v213
    %v226 = vshrl.u32 920167782, %v214
    %v227 = vor.u32 %v225, %v226
    %v228 = vshll.u32 920167782, %v213
    %v229 = vshrl.u32 1326507024, %v214
    %v230 = vor.u32 %v228, %v229
    %vm231 = vcmp.lt.s32.totalorder %v212, 1
    %vm232 = vcmp.lt.s32.totalorder %v212, 2
    %vm233 = vcmp.lt.s32.totalorder %v212, 3
    %vm234 = vcmp.lt.s32.totalorder %v212, 4
    %v235 = vsel %vm231, %v215, %v218
    %v236 = vsel %vm234, %v224, 2102212464
    %v237 = vsel %vm233, %v221, %v236
    %v238 = vsel %vm232, %v235, %v237
    %v239 = vsel %vm231, %v218, %v221
    %v240 = vsel %vm234, %v227, 920167782
    %v241 = vsel %vm233, %v224, %v240
    %v242 = vsel %vm232, %v239, %v241
    %v243 = vsel %vm231, %v221, %v224
    %v244 = vsel %vm234, %v230, 1326507024
    %v245 = vsel %vm233, %v227, %v244
    %v246 = vsel %vm232, %v243, %v245
    %v247 = vshll.u32 %v207, 8
    %v248 = vmul.u32.u64.compose %v247, %v246
    %v249 = vextract.low.u32 %v248
    %v250 = vextract.high.u32 %v248
    %v251 = vmul.u32.u64.compose %v247, %v242
    %v252 = vextract.low.u32 %v251
    %v253 = vextract.high.u32 %v251
    %v254 = vmul.u32 %v247, %v238
    %v255 = vadd.s32 %v250, %v252
    %vm256 = vc.u32 %v250, %v252
    %v257 = vadd.s32 %v253, 1
    %v258 = vsel %vm256, %v257, %v253
    %v259 = vadd.s32 %v254, %v258
    %v260 = vadd.s32 %v259, 536870912
    %v261 = vshrl.u32 %v260, 30
    %v262 = vshll.u32 %v261, 30
    %v263 = vsub.s32 %v259, %v262
    %vm264 = vcmp.lt.s32.totalorder %v263, 0
    %v265 = vsub.s32 0, %v263
    %v266 = vsel %vm264, %v265, %v263
    %v267 = vclz %v266
    %v268 = vsub.s32 %v267, 2
    %vm269 = vcmp.gt.s32.totalorder 0, %v268
    %v270 = vsel %vm269, 0, %v268
    %v271 = vsub.s32 32, %v270
    %v272 = vshll.u32 %v263, %v270
    %v273 = vshrl.u32 %v255, %v271
    %v274 = vor.u32 %v272, %v273
    %v275 = vsub.s32 4294967266, %v270
    %v276 = vadd.s32 %v275, 127
    %v277 = vshll.u32 %v276, 23
    %v278 = vor.u32 4788187, %v277
    %v279 = vand.u32 2147483647, %v278
    %v281 = vcvt.s32.f32 %v274
    %v282 = vmul.f32 %v281, %v279
    %v283 = vxor.u32 %v282, 2147483648
    %v284 = vsel %vm201, %v283, %v282
    %v285 = vsub.s32 4, %v261
    %v286 = vsel %vm201, %v285, %v261
    %v287 = vsel %vm200, %v92, %v284
    %v288 = vsel %vm200, 0, %v286
    %v289 = vcosq.f32.pop %v287
    %v290 = vsinq.f32.pop %v287
    %vm291 = vweird.f32 %v92
    %v292 = vadd.s32 %v288, 3
    %v293 = vand.u32 %v292, 3
    %vm294 = vcmp.lt.s32.totalorder %v293, 2
    %vm295 = vcmp.eq.s32.totalorder %v293, 0
    %v296 = vxor.u32 %v290, 2147483648
    %v297 = vsel %vm295, %v289, %v296
    %vm298 = vcmp.eq.s32.totalorder %v293, 2
    %v299 = vxor.u32 %v289, 2147483648
    %v300 = vsel %vm298, %v299, %v290
    %v301 = vsel %vm294, %v297, %v300
    %v302 = vsel %vm291, nan, %v301
    %v303 = vand.u32 2147483647, %v93
    %vm304 = vcmp.le.f32.partialorder %v303, 0.7853982
    %vm305 = vcmp.lt.s32.totalorder %v93, 0
    %v306 = vand.u32 %v93, 2139095040
    %v307 = vshrl.u32 %v306, 23
    %v308 = vsub.s32 %v307, 127
    %v309 = vand.u32 2147483647, %v93
    %v310 = vand.u32 %v309, 8388607
    %v311 = vor.u32 %v310, 8388608
    %v312 = vsub.s32 0, %v311
    %v313 = vadd.s32 %v308, 1
    %vm314 = vcmp.gt.s32.totalorder %v313, 0
    %v315 = vsel %vm314, %v313, 0
    %v316 = vshrl.u32 %v315, 5
    %v317 = vand.u32 %v315, 31
    %v318 = vsub.s32 32, %v317
    %v319 = vshrl.u32 683565275, %v318
    %v320 = vshll.u32 683565275, %v317
    %v321 = vshrl.u32 2475754826, %v318
    %v322 = vor.u32 %v320, %v321
    %v323 = vshll.u32 2475754826, %v317
    %v324 = vshrl.u32 2131351028, %v318
    %v325 = vor.u32 %v323, %v324
    %v326 = vshll.u32 2131351028, %v317
    %v327 = vshrl.u32 2102212464, %v318
    %v328 = vor.u32 %v326, %v327
    %v329 = vshll.u32 2102212464, %v317
    %v330 = vshrl.u32 920167782, %v318
    %v331 = vor.u32 %v329, %v330
    %v332 = vshll.u32 920167782, %v317
    %v333 = vshrl.u32 1326507024, %v318
    %v334 = vor.u32 %v332, %v333
    %vm335 = vcmp.lt.s32.totalorder %v316, 1
    %vm336 = vcmp.lt.s32.totalorder %v316, 2
    %vm337 = vcmp.lt.s32.totalorder %v316, 3
    %vm338 = vcmp.lt.s32.totalorder %v316, 4
    %v339 = vsel %vm335, %v319, %v322
    %v340 = vsel %vm338, %v328, 2102212464
    %v341 = vsel %vm337, %v325, %v340
    %v342 = vsel %vm336, %v339, %v341
    %v343 = vsel %vm335, %v322, %v325
    %v344 = vsel %vm338, %v331, 920167782
    %v345 = vsel %vm337, %v328, %v344
    %v346 = vsel %vm336, %v343, %v345
    %v347 = vsel %vm335, %v325, %v328
    %v348 = vsel %vm338, %v334, 1326507024
    %v349 = vsel %vm337, %v331, %v348
    %v350 = vsel %vm336, %v347, %v349
    %v351 = vshll.u32 %v311, 8
    %v352 = vmul.u32.u64.compose %v351, %v350
    %v353 = vextract.low.u32 %v352
    %v354 = vextract.high.u32 %v352
    %v355 = vmul.u32.u64.compose %v351, %v346
    %v356 = vextract.low.u32 %v355
    %v357 = vextract.high.u32 %v355
    %v358 = vmul.u32 %v351, %v342
    %v359 = vadd.s32 %v354, %v356
    %vm360 = vc.u32 %v354, %v356
    %v361 = vadd.s32 %v357, 1
    %v362 = vsel %vm360, %v361, %v357
    %v363 = vadd.s32 %v358, %v362
    %v364 = vadd.s32 %v363, 536870912
    %v365 = vshrl.u32 %v364, 30
    %v366 = vshll.u32 %v365, 30
    %v367 = vsub.s32 %v363, %v366
    %vm368 = vcmp.lt.s32.totalorder %v367, 0
    %v369 = vsub.s32 0, %v367
    %v370 = vsel %vm368, %v369, %v367
    %v371 = vclz %v370
    %v372 = vsub.s32 %v371, 2
    %vm373 = vcmp.gt.s32.totalorder 0, %v372
    %v374 = vsel %vm373, 0, %v372
    %v375 = vsub.s32 32, %v374
    %v376 = vshll.u32 %v367, %v374
    %v377 = vshrl.u32 %v359, %v375
    %v378 = vor.u32 %v376, %v377
    %v379 = vsub.s32 4294967266, %v374
    %v380 = vadd.s32 %v379, 127
    %v381 = vshll.u32 %v380, 23
    %v382 = vor.u32 4788187, %v381
    %v383 = vand.u32 2147483647, %v382
    %v385 = vcvt.s32.f32 %v378
    %v386 = vmul.f32 %v385, %v383
    %v387 = vxor.u32 %v386, 2147483648
    %v388 = vsel %vm305, %v387, %v386
    %v389 = vsub.s32 4, %v365
    %v390 = vsel %vm305, %v389, %v365
    %v391 = vsel %vm304, %v93, %v388
    %v392 = vsel %vm304, 0, %v390
    %v393 = vcosq.f32.pop %v391
    %v394 = vsinq.f32.pop %v391
    %vm395 = vweird.f32 %v93
    %v396 = vadd.s32 %v392, 3
    %v397 = vand.u32 %v396, 3
    %vm398 = vcmp.lt.s32.totalorder %v397, 2
    %vm399 = vcmp.eq.s32.totalorder %v397, 0
    %v400 = vxor.u32 %v394, 2147483648
    %v401 = vsel %vm399, %v393, %v400
    %vm402 = vcmp.eq.s32.totalorder %v397, 2
    %v403 = vxor.u32 %v393, 2147483648
    %v404 = vsel %vm402, %v403, %v394
    %v405 = vsel %vm398, %v401, %v404
    %v406 = vsel %vm395, nan, %v405
    %v407 = vand.u32 2147483647, %v94
    %vm408 = vcmp.le.f32.partialorder %v407, 0.7853982
    %vm409 = vcmp.lt.s32.totalorder %v94, 0
    %v410 = vand.u32 %v94, 2139095040
    %v411 = vshrl.u32 %v410, 23
    %v412 = vsub.s32 %v411, 127
    %v413 = vand.u32 2147483647, %v94
    %v414 = vand.u32 %v413, 8388607
    %v415 = vor.u32 %v414, 8388608
    %v416 = vsub.s32 0, %v415
    %v417 = vadd.s32 %v412, 1
    %vm418 = vcmp.gt.s32.totalorder %v417, 0
    %v419 = vsel %vm418, %v417, 0
    %v420 = vshrl.u32 %v419, 5
    %v421 = vand.u32 %v419, 31
    %v422 = vsub.s32 32, %v421
    %v423 = vshrl.u32 683565275, %v422
    %v424 = vshll.u32 683565275, %v421
    %v425 = vshrl.u32 2475754826, %v422
    %v426 = vor.u32 %v424, %v425
    %v427 = vshll.u32 2475754826, %v421
    %v428 = vshrl.u32 2131351028, %v422
    %v429 = vor.u32 %v427, %v428
    %v430 = vshll.u32 2131351028, %v421
    %v431 = vshrl.u32 2102212464, %v422
    %v432 = vor.u32 %v430, %v431
    %v433 = vshll.u32 2102212464, %v421
    %v434 = vshrl.u32 920167782, %v422
    %v435 = vor.u32 %v433, %v434
    %v436 = vshll.u32 920167782, %v421
    %v437 = vshrl.u32 1326507024, %v422
    %v438 = vor.u32 %v436, %v437
    %vm439 = vcmp.lt.s32.totalorder %v420, 1
    %vm440 = vcmp.lt.s32.totalorder %v420, 2
    %vm441 = vcmp.lt.s32.totalorder %v420, 3
    %vm442 = vcmp.lt.s32.totalorder %v420, 4
    %v443 = vsel %vm439, %v423, %v426
    %v444 = vsel %vm442, %v432, 2102212464
    %v445 = vsel %vm441, %v429, %v444
    %v446 = vsel %vm440, %v443, %v445
    %v447 = vsel %vm439, %v426, %v429
    %v448 = vsel %vm442, %v435, 920167782
    %v449 = vsel %vm441, %v432, %v448
    %v450 = vsel %vm440, %v447, %v449
    %v451 = vsel %vm439, %v429, %v432
    %v452 = vsel %vm442, %v438, 1326507024
    %v453 = vsel %vm441, %v435, %v452
    %v454 = vsel %vm440, %v451, %v453
    %v455 = vshll.u32 %v415, 8
    %v456 = vmul.u32.u64.compose %v455, %v454
    %v457 = vextract.low.u32 %v456
    %v458 = vextract.high.u32 %v456
    %v459 = vmul.u32.u64.compose %v455, %v450
    %v460 = vextract.low.u32 %v459
    %v461 = vextract.high.u32 %v459
    %v462 = vmul.u32 %v455, %v446
    %v463 = vadd.s32 %v458, %v460
    %vm464 = vc.u32 %v458, %v460
    %v465 = vadd.s32 %v461, 1
    %v466 = vsel %vm464, %v465, %v461
    %v467 = vadd.s32 %v462, %v466
    %v468 = vadd.s32 %v467, 536870912
    %v469 = vshrl.u32 %v468, 30
    %v470 = vshll.u32 %v469, 30
    %v471 = vsub.s32 %v467, %v470
    %vm472 = vcmp.lt.s32.totalorder %v471, 0
    %v473 = vsub.s32 0, %v471
    %v474 = vsel %vm472, %v473, %v471
    %v475 = vclz %v474
    %v476 = vsub.s32 %v475, 2
    %vm477 = vcmp.gt.s32.totalorder 0, %v476
    %v478 = vsel %vm477, 0, %v476
    %v479 = vsub.s32 32, %v478
    %v480 = vshll.u32 %v471, %v478
    %v481 = vshrl.u32 %v463, %v479
    %v482 = vor.u32 %v480, %v481
    %v483 = vsub.s32 4294967266, %v478
    %v484 = vadd.s32 %v483, 127
    %v485 = vshll.u32 %v484, 23
    %v486 = vor.u32 4788187, %v485
    %v487 = vand.u32 2147483647, %v486
    %v489 = vcvt.s32.f32 %v482
    %v490 = vmul.f32 %v489, %v487
    %v491 = vxor.u32 %v490, 2147483648
    %v492 = vsel %vm409, %v491, %v490
    %v493 = vsub.s32 4, %v469
    %v494 = vsel %vm409, %v493, %v469
    %v495 = vsel %vm408, %v94, %v492
    %v496 = vsel %vm408, 0, %v494
    %v497 = vcosq.f32.pop %v495
    %v498 = vsinq.f32.pop %v495
    %vm499 = vweird.f32 %v94
    %v500 = vadd.s32 %v496, 3
    %v501 = vand.u32 %v500, 3
    %vm502 = vcmp.lt.s32.totalorder %v501, 2
    %vm503 = vcmp.eq.s32.totalorder %v501, 0
    %v504 = vxor.u32 %v498, 2147483648
    %v505 = vsel %vm503, %v497, %v504
    %vm506 = vcmp.eq.s32.totalorder %v501, 2
    %v507 = vxor.u32 %v497, 2147483648
    %v508 = vsel %vm506, %v507, %v498
    %v509 = vsel %vm502, %v505, %v508
    %v510 = vsel %vm499, nan, %v509
    %511 = vst [vmem:[#allocation7] sm:$0xff] %v198
    %512 = vst [vmem:[#allocation7 + $0x8] sm:$0xff] %v302
    %513 = vst [vmem:[#allocation7 + $0x10] sm:$0xff] %v406
    %514 = vst [vmem:[#allocation7 + $0x18] sm:$0xff] %v510
    // Predicated region
    $region18: #{tpu_custom_call.1} parent=1 // pred_check
      _
    $region19: #{tpu_custom_call.1} parent=1 // pred_check_branch
      %516 = sbr.rel (0) target = $region21
    $region20: #{tpu_custom_call.1} parent=1 // pred_region
      %s518 = ssub.s32 512, 512
      %519 = vsyncadd [#allocation4], %s518
      %s521 = sshll.u32 [#allocation7], 4
      %s522 = int_to_ptr.vmem [resolvable:$true] %s521
      %524 = dma.vmem_to_hbm [thread:$0]  %s522, 512, %s2, [#allocation4]
    $region21: #{tpu_custom_call.1} parent=1 // pred_fallthru
      _
    // Predicated region
    $region22: #{tpu_custom_call.1} parent=1 // pred_check
      _
    $region23: #{tpu_custom_call.1} parent=1 // pred_check_branch
      %526 = sbr.rel (0) target = $region25
    $region24: #{tpu_custom_call.1} parent=1 // pred_region
      %527 = dma.done [#allocation4], 512
    $region25: #{tpu_custom_call.1} parent=1 // pred_fallthru
      _
    %528 = vsyncpa [#allocation3], 1
    %529 = vsyncpa [#allocation6], 1
    %530 = vsyncpa [#allocation4], 1

</llo_original>
